<compile_context>
chip_gen: v6e
topology: v6e:2x2x1
jax: 0.10.0
libtpu: 0.0.40
codegen_flags: <defaults>
</compile_context>

<pallas_src>
import jax
import jax.numpy as jnp
from jax import lax
from jax.experimental import pallas as pl
from jax.experimental.pallas import tpu as pltpu


def _sigmoid(x):
    # sigmoid(x) == 0.5 * tanh(0.5 * x) + 0.5 : one EUP op per element instead of
    # exp + divide, roughly halving transcendental pushes in the binding slot.
    return 0.5 * jnp.tanh(0.5 * x) + 0.5


def _make_kernel(n_sub, sub_rows):
    """Kernel over one (tile, Fp) batch block, split into `n_sub` row sub-blocks."""
    bf16 = jnp.bfloat16

    def kernel(x_ref, w1_ref, hb1_ref, w2_ref, hb2_ref,
               w2t_ref, vb2_ref, w1t_ref, vb1_ref, out_ref):
        # Biases are tiny; load once before the unrolled sub-tile loop.
        hb1 = hb1_ref[...]
        hb2 = hb2_ref[...]
        vb2 = vb2_ref[...]
        vb1 = vb1_ref[...]

        def body(b, carry):
            rows = pl.ds(b * sub_rows, sub_rows)
            x = x_ref[rows, :]
            # Encoder layer 1: sigmoid(X @ W1 + hb1)
            h1 = _sigmoid(jnp.dot(x, w1_ref[...],
                                  preferred_element_type=jnp.float32) + hb1)
            # Encoder layer 2: sigmoid(h1 @ W2 + hb2)
            h2 = _sigmoid(jnp.dot(h1.astype(bf16), w2_ref[...],
                                  preferred_element_type=jnp.float32) + hb2)
            # Decoder layer 1: sigmoid(h2 @ W2.T + vb2)   (tied weights)
            d1 = _sigmoid(jnp.dot(h2.astype(bf16), w2t_ref[...],
                                  preferred_element_type=jnp.float32) + vb2)
            # Decoder output layer: d1 @ W1.T + vb1  (no activation)
            out = jnp.dot(d1.astype(bf16), w1t_ref[...],
                          preferred_element_type=jnp.float32) + vb1
            out_ref[rows, :] = out.astype(out_ref.dtype)
            return carry

        # Statically unrolled so independent sub-blocks interleave MXU / EUP / VPU.
        lax.fori_loop(0, n_sub, body, 0, unroll=True)

    return kernel


def _round_up(x, m):
    return ((x + m - 1) // m) * m


def _pad2(a, rows, cols):
    r, c = a.shape
    return jnp.zeros((rows, cols), a.dtype).at[:r, :c].set(a)


def prepare_aedbn_params(w1, hb1, w2, hb2, vb1, vb2):
    """One-time weight prep: pad to lane multiples, cast to bf16, build the
    tied-weight transposes.  Hoisted out of the forward path so repeated
    inference does not re-pay XLA pad/cast/transpose over the full weights."""
    f, h1 = w1.shape
    h1b, h2 = w2.shape
    assert h1b == h1, "W2 rows must match W1 cols"
    fp, h1p, h2p = _round_up(f, 128), _round_up(h1, 128), _round_up(h2, 128)
    bf16 = jnp.bfloat16
    w1_p = _pad2(jnp.asarray(w1, jnp.float32), fp, h1p).astype(bf16)   # (Fp,  H1p)
    w2_p = _pad2(jnp.asarray(w2, jnp.float32), h1p, h2p).astype(bf16)  # (H1p, H2p)
    return dict(
        shapes=(f, h1, h2, fp, h1p, h2p),
        w1=w1_p, w2=w2_p,
        w2t=w2_p.T,                                   # (H2p, H1p) tied decoder
        w1t=w1_p.T,                                   # (H1p, Fp)  tied decoder
        hb1=_pad2(jnp.asarray(hb1, jnp.float32).reshape(1, -1), 1, h1p),
        hb2=_pad2(jnp.asarray(hb2, jnp.float32).reshape(1, -1), 1, h2p),
        vb2=_pad2(jnp.asarray(vb2, jnp.float32).reshape(1, -1), 1, h1p),
        vb1=_pad2(jnp.asarray(vb1, jnp.float32).reshape(1, -1), 1, fp),
    )


def aedbn_forward(x, params, *, tile_n=512, out_dtype=jnp.float32,
                  vmem_budget_bytes=48 * 1024 * 1024):
    """Fused AEDBN forward.  x: (N, F) f32; params from prepare_aedbn_params."""
    f, h1, h2, fp, h1p, h2p = params["shapes"]
    n = x.shape[0]
    assert x.shape[1] == f
    out_bytes = jnp.dtype(out_dtype).itemsize

    # ---- tile selection -----------------------------------------------------
    n16 = _round_up(n, 16)                        # bf16 sublane tile on batch dim
    tile_n = max(16, (int(tile_n) // 16) * 16)    # validate user tile_n
    if n16 <= 128:
        tile = n16                                # tiny batch: single small step
    else:
        # >= ~4 grid steps (>= 2 per TensorCore under megacore) when N allows,
        # but keep >= 128 rows per MXU push.
        tile = min(tile_n, max(128, _round_up((n16 + 3) // 4, 16)))

    # Cap tile so per-step VMEM (double-buffered X/out + resident weights +
    # live intermediates) stays inside the budget (v7x: 64 MiB physical).
    weights_b = (2 * fp * h1p + 2 * h1p * h2p) * 2 * 2    # 4 bf16 mats, worst-case 2 bufs
    biases_b = (2 * h1p + h2p + fp) * 4 * 2
    per_row_b = fp * (2 * 2 + 2 * out_bytes)              # dbl-buffered X (bf16) + out
    per_row_b += (2 * h1p + h2p) * 6 + fp * 4             # live h1/h2/d1 (+bf16 casts) + result
    avail = vmem_budget_bytes - weights_b - biases_b
    if avail > 0:
        cap = max(16, (avail // per_row_b // 16) * 16)
        tile = max(16, min(tile, cap))
    n_pad = _round_up(n16, tile)

    # In-kernel sub-tiling: 2-4 row sub-blocks (multiple of 16, >= 64 rows each).
    n_sub = 1
    for cand in (4, 2):
        if tile % cand == 0:
            sub = tile // cand
            if sub % 16 == 0 and sub >= 64:
                n_sub = cand
                break
    sub_rows = tile // n_sub

    # ---- input padding (batch only; weights already prepared) ---------------
    x_p = _pad2(jnp.asarray(x, jnp.float32), n_pad, fp).astype(jnp.bfloat16)

    def pinned(shape):
        # Constant index_map -> block is DMA'd once and stays VMEM-resident.
        # Buffered(1) drops the needless second pipeline buffer for it.
        index_map = lambda i: (0, 0)
        try:
            return pl.BlockSpec(shape, index_map, pipeline_mode=pl.Buffered(1))
        except (TypeError, AttributeError):
            return pl.BlockSpec(shape, index_map)

    flops = 2 * n_pad * (fp * h1p + h1p * h2p + h2p * h1p + h1p * fp)
    transcendentals = n_pad * (h1p + h2p + h1p)          # one tanh per activation
    bytes_accessed = (x_p.size * 2
                      + (2 * fp * h1p + 2 * h1p * h2p) * 2
                      + (2 * h1p + h2p + fp) * 4
                      + n_pad * fp * out_bytes)
    cost = pl.CostEstimate(flops=flops, transcendentals=transcendentals,
                           bytes_accessed=bytes_accessed)

    est = weights_b + biases_b + tile * per_row_b
    vmem_limit = int(min(48 * 1024 * 1024,
                         max(32 * 1024 * 1024, est * 3 // 2 + (4 << 20))))

    out_p = pl.pallas_call(
        _make_kernel(n_sub, sub_rows),
        out_shape=jax.ShapeDtypeStruct((n_pad, fp), out_dtype),
        grid=(n_pad // tile,),
        in_specs=[
            pl.BlockSpec((tile, fp), lambda i: (i, 0)),   # X tile (pipelined)
            pinned((fp, h1p)), pinned((1, h1p)),          # W1,   hb1
            pinned((h1p, h2p)), pinned((1, h2p)),         # W2,   hb2
            pinned((h2p, h1p)), pinned((1, h1p)),         # W2^T, vb2
            pinned((h1p, fp)), pinned((1, fp)),           # W1^T, vb1
        ],
        out_specs=pl.BlockSpec((tile, fp), lambda i: (i, 0)),
        compiler_params=pltpu.CompilerParams(
            dimension_semantics=("parallel",),
            vmem_limit_bytes=vmem_limit),
        cost_estimate=cost,
    )(x_p, params["w1"], params["hb1"], params["w2"], params["hb2"],
      params["w2t"], params["vb2"], params["w1t"], params["vb1"])

    return out_p[:n, :f]


if __name__ == "__main__":
    # Small shapes consistent with forward(X) on (n_samples, n_features),
    # using a concrete 2-RBM DBN (n_hiddens = (64, 32)).
    n_samples, n_features = 8, 32
    h1_dim, h2_dim = 64, 32

    key = jax.random.PRNGKey(0)
    kx, k1, k2, kb = jax.random.split(key, 4)
    kb1, kb2, kv1, kv2 = jax.random.split(kb, 4)

    x = jax.random.normal(kx, (n_samples, n_features), jnp.float32)
    s1 = 1.0 / jnp.sqrt(jnp.float32(n_features))
    w1 = jax.random.uniform(k1, (n_features, h1_dim), jnp.float32, -s1, s1)
    hb1 = jax.random.uniform(kb1, (h1_dim,), jnp.float32, -s1, s1)
    vb1 = jax.random.uniform(kv1, (n_features,), jnp.float32, -s1, s1)
    s2 = 1.0 / jnp.sqrt(jnp.float32(h1_dim))
    w2 = jax.random.uniform(k2, (h1_dim, h2_dim), jnp.float32, -s2, s2)
    hb2 = jax.random.uniform(kb2, (h2_dim,), jnp.float32, -s2, s2)
    vb2 = jax.random.uniform(kv2, (h1_dim,), jnp.float32, -s2, s2)

    # One-time weight prep (hoisted out of the forward path), then forward.
    params = prepare_aedbn_params(w1, hb1, w2, hb2, vb1, vb2)
    out = aedbn_forward(x, params)
    out = jax.block_until_ready(out)
    assert out.shape == (n_samples, n_features)

    # Reference 1: exact module math in f32 (PyTorch-equivalent).
    e1 = jax.nn.sigmoid(x @ w1 + hb1)
    e2 = jax.nn.sigmoid(e1 @ w2 + hb2)
    dd1 = jax.nn.sigmoid(e2 @ w2.T + vb2)
    ref_f32 = dd1 @ w1.T + vb1

    # Reference 2: same bf16-operand / f32-accumulate casting as the kernel.
    bf16 = jnp.bfloat16
    r1 = jax.nn.sigmoid(
        jnp.dot(x.astype(bf16), w1.astype(bf16),
                preferred_element_type=jnp.float32) + hb1)
    r2 = jax.nn.sigmoid(
        jnp.dot(r1.astype(bf16), w2.astype(bf16),
                preferred_element_type=jnp.float32) + hb2)
    r3 = jax.nn.sigmoid(
        jnp.dot(r2.astype(bf16), w2.astype(bf16).T,
                preferred_element_type=jnp.float32) + vb2)
    ref_bf16 = jnp.dot(r3.astype(bf16), w1.astype(bf16).T,
                       preferred_element_type=jnp.float32) + vb1

    assert jnp.allclose(out, ref_bf16, atol=1e-2, rtol=1e-2), "mismatch vs bf16 ref"
    assert jnp.allclose(out, ref_f32, atol=5e-2, rtol=5e-2), "mismatch vs f32 ref"

    print("KERNEL_OK")
</pallas_src>

<mosaic_0001>
module attributes {stable_mosaic.version = 11 : i64} {
  func.func @kernel(%arg0: i32, %arg1: memref<16x128xbf16, #tpu.memory_space<vmem>>, %arg2: memref<128x128xbf16, #tpu.memory_space<vmem>>, %arg3: memref<1x128xf32, #tpu.memory_space<vmem>>, %arg4: memref<128x128xbf16, #tpu.memory_space<vmem>>, %arg5: memref<1x128xf32, #tpu.memory_space<vmem>>, %arg6: memref<128x128xbf16, #tpu.memory_space<vmem>>, %arg7: memref<1x128xf32, #tpu.memory_space<vmem>>, %arg8: memref<128x128xbf16, #tpu.memory_space<vmem>>, %arg9: memref<1x128xf32, #tpu.memory_space<vmem>>, %arg10: memref<16x128xf32, #tpu.memory_space<vmem>>) attributes {dimension_semantics = [#tpu.dimension_semantics<parallel>], iteration_bounds = array<i64: 1>, scalar_prefetch = 0 : i64, scratch_operands = 0 : i64, tpu.core_type = #tpu.core_type<tc>, window_params = [{transform_indices = @transform_0, window_bounds = array<i64: 16, 128>}, {pipeline_mode = #tpu.pipeline_mode<synchronous>, transform_indices = @transform_1, window_bounds = array<i64: 128, 128>}, {pipeline_mode = #tpu.pipeline_mode<synchronous>, transform_indices = @transform_2, window_bounds = array<i64: 1, 128>}, {pipeline_mode = #tpu.pipeline_mode<synchronous>, transform_indices = @transform_3, window_bounds = array<i64: 128, 128>}, {pipeline_mode = #tpu.pipeline_mode<synchronous>, transform_indices = @transform_4, window_bounds = array<i64: 1, 128>}, {pipeline_mode = #tpu.pipeline_mode<synchronous>, transform_indices = @transform_5, window_bounds = array<i64: 128, 128>}, {pipeline_mode = #tpu.pipeline_mode<synchronous>, transform_indices = @transform_6, window_bounds = array<i64: 1, 128>}, {pipeline_mode = #tpu.pipeline_mode<synchronous>, transform_indices = @transform_7, window_bounds = array<i64: 128, 128>}, {pipeline_mode = #tpu.pipeline_mode<synchronous>, transform_indices = @transform_8, window_bounds = array<i64: 1, 128>}, {transform_indices = @transform_9, window_bounds = array<i64: 16, 128>}]} {
    %c0 = arith.constant 0 : index
    %c0_0 = arith.constant 0 : index
    %0 = vector.load %arg3[%c0, %c0_0] : memref<1x128xf32, #tpu.memory_space<vmem>>, vector<1x128xf32>
    %c0_1 = arith.constant 0 : index
    %c0_2 = arith.constant 0 : index
    %1 = vector.load %arg5[%c0_1, %c0_2] : memref<1x128xf32, #tpu.memory_space<vmem>>, vector<1x128xf32>
    %c0_3 = arith.constant 0 : index
    %c0_4 = arith.constant 0 : index
    %2 = vector.load %arg7[%c0_3, %c0_4] : memref<1x128xf32, #tpu.memory_space<vmem>>, vector<1x128xf32>
    %c0_5 = arith.constant 0 : index
    %c0_6 = arith.constant 0 : index
    %3 = vector.load %arg9[%c0_5, %c0_6] : memref<1x128xf32, #tpu.memory_space<vmem>>, vector<1x128xf32>
    %c0_i32 = arith.constant 0 : i32
    %c16_i32 = arith.constant 16 : i32
    %4 = arith.muli %c0_i32, %c16_i32 : i32
    %5 = arith.index_cast %4 : i32 to index
    %c0_7 = arith.constant 0 : index
    %6 = vector.load %arg1[%5, %c0_7] : memref<16x128xbf16, #tpu.memory_space<vmem>>, vector<16x128xbf16>
    %c0_8 = arith.constant 0 : index
    %c0_9 = arith.constant 0 : index
    %7 = vector.load %arg2[%c0_8, %c0_9] : memref<128x128xbf16, #tpu.memory_space<vmem>>, vector<128x128xbf16>
    %cst = arith.constant dense<0.000000e+00> : vector<16x128xf32>
    %8 = tpu.matmul %6, %7, %cst {dimension_numbers = #tpu.dot_dimension_numbers<[1], [0], [0], [1], [0, 0, 1, 1], [], []>} : vector<16x128xbf16>, vector<128x128xbf16>, vector<16x128xf32> -> vector<16x128xf32>
    %9 = vector.broadcast %0 : vector<1x128xf32> to vector<16x128xf32>
    %10 = arith.addf %8, %9 : vector<16x128xf32>
    %cst_10 = arith.constant 5.000000e-01 : f32
    %11 = vector.broadcast %cst_10 : f32 to vector<16x128xf32>
    %12 = arith.mulf %11, %10 : vector<16x128xf32>
    %13 = math.tanh %12 : vector<16x128xf32>
    %cst_11 = arith.constant 5.000000e-01 : f32
    %14 = vector.broadcast %cst_11 : f32 to vector<16x128xf32>
    %15 = arith.mulf %14, %13 : vector<16x128xf32>
    %cst_12 = arith.constant 5.000000e-01 : f32
    %16 = vector.broadcast %cst_12 : f32 to vector<16x128xf32>
    %17 = arith.addf %15, %16 : vector<16x128xf32>
    %18 = arith.truncf %17 : vector<16x128xf32> to vector<16x128xbf16>
    %c0_13 = arith.constant 0 : index
    %c0_14 = arith.constant 0 : index
    %19 = vector.load %arg4[%c0_13, %c0_14] : memref<128x128xbf16, #tpu.memory_space<vmem>>, vector<128x128xbf16>
    %cst_15 = arith.constant dense<0.000000e+00> : vector<16x128xf32>
    %20 = tpu.matmul %18, %19, %cst_15 {dimension_numbers = #tpu.dot_dimension_numbers<[1], [0], [0], [1], [0, 0, 1, 1], [], []>} : vector<16x128xbf16>, vector<128x128xbf16>, vector<16x128xf32> -> vector<16x128xf32>
    %21 = vector.broadcast %1 : vector<1x128xf32> to vector<16x128xf32>
    %22 = arith.addf %20, %21 : vector<16x128xf32>
    %cst_16 = arith.constant 5.000000e-01 : f32
    %23 = vector.broadcast %cst_16 : f32 to vector<16x128xf32>
    %24 = arith.mulf %23, %22 : vector<16x128xf32>
    %25 = math.tanh %24 : vector<16x128xf32>
    %cst_17 = arith.constant 5.000000e-01 : f32
    %26 = vector.broadcast %cst_17 : f32 to vector<16x128xf32>
    %27 = arith.mulf %26, %25 : vector<16x128xf32>
    %cst_18 = arith.constant 5.000000e-01 : f32
    %28 = vector.broadcast %cst_18 : f32 to vector<16x128xf32>
    %29 = arith.addf %27, %28 : vector<16x128xf32>
    %30 = arith.truncf %29 : vector<16x128xf32> to vector<16x128xbf16>
    %c0_19 = arith.constant 0 : index
    %c0_20 = arith.constant 0 : index
    %31 = vector.load %arg6[%c0_19, %c0_20] : memref<128x128xbf16, #tpu.memory_space<vmem>>, vector<128x128xbf16>
    %cst_21 = arith.constant dense<0.000000e+00> : vector<16x128xf32>
    %32 = tpu.matmul %30, %31, %cst_21 {dimension_numbers = #tpu.dot_dimension_numbers<[1], [0], [0], [1], [0, 0, 1, 1], [], []>} : vector<16x128xbf16>, vector<128x128xbf16>, vector<16x128xf32> -> vector<16x128xf32>
    %33 = vector.broadcast %2 : vector<1x128xf32> to vector<16x128xf32>
    %34 = arith.addf %32, %33 : vector<16x128xf32>
    %cst_22 = arith.constant 5.000000e-01 : f32
    %35 = vector.broadcast %cst_22 : f32 to vector<16x128xf32>
    %36 = arith.mulf %35, %34 : vector<16x128xf32>
    %37 = math.tanh %36 : vector<16x128xf32>
    %cst_23 = arith.constant 5.000000e-01 : f32
    %38 = vector.broadcast %cst_23 : f32 to vector<16x128xf32>
    %39 = arith.mulf %38, %37 : vector<16x128xf32>
    %cst_24 = arith.constant 5.000000e-01 : f32
    %40 = vector.broadcast %cst_24 : f32 to vector<16x128xf32>
    %41 = arith.addf %39, %40 : vector<16x128xf32>
    %42 = arith.truncf %41 : vector<16x128xf32> to vector<16x128xbf16>
    %c0_25 = arith.constant 0 : index
    %c0_26 = arith.constant 0 : index
    %43 = vector.load %arg8[%c0_25, %c0_26] : memref<128x128xbf16, #tpu.memory_space<vmem>>, vector<128x128xbf16>
    %cst_27 = arith.constant dense<0.000000e+00> : vector<16x128xf32>
    %44 = tpu.matmul %42, %43, %cst_27 {dimension_numbers = #tpu.dot_dimension_numbers<[1], [0], [0], [1], [0, 0, 1, 1], [], []>} : vector<16x128xbf16>, vector<128x128xbf16>, vector<16x128xf32> -> vector<16x128xf32>
    %45 = vector.broadcast %3 : vector<1x128xf32> to vector<16x128xf32>
    %46 = arith.addf %44, %45 : vector<16x128xf32>
    %47 = arith.index_cast %4 : i32 to index
    %c0_28 = arith.constant 0 : index
    %48 = vector.load %arg10[%47, %c0_28] : memref<16x128xf32, #tpu.memory_space<vmem>>, vector<16x128xf32>
    tpu.vector_store %arg10[%47, %c0_28], %46 {strides = array<i32>} : memref<16x128xf32, #tpu.memory_space<vmem>>, vector<16x128xf32>,
    %c1_i32 = arith.constant 1 : i32
    return
  }
  func.func @transform_0(%arg0: i32) -> (i32, i32) {
    %c0_i32 = arith.constant 0 : i32
    %c0_i32_0 = arith.constant 0 : i32
    return %arg0, %c0_i32 : i32, i32
  }
  func.func @transform_1(%arg0: i32) -> (i32, i32) {
    %c0_i32 = arith.constant 0 : i32
    %c0_i32_0 = arith.constant 0 : i32
    %c0_i32_1 = arith.constant 0 : i32
    return %c0_i32, %c0_i32_0 : i32, i32
  }
  func.func @transform_2(%arg0: i32) -> (i32, i32) {
    %c0_i32 = arith.constant 0 : i32
    %c0_i32_0 = arith.constant 0 : i32
    %c0_i32_1 = arith.constant 0 : i32
    return %c0_i32, %c0_i32_0 : i32, i32
  }
  func.func @transform_3(%arg0: i32) -> (i32, i32) {
    %c0_i32 = arith.constant 0 : i32
    %c0_i32_0 = arith.constant 0 : i32
    %c0_i32_1 = arith.constant 0 : i32
    return %c0_i32, %c0_i32_0 : i32, i32
  }
  func.func @transform_4(%arg0: i32) -> (i32, i32) {
    %c0_i32 = arith.constant 0 : i32
    %c0_i32_0 = arith.constant 0 : i32
    %c0_i32_1 = arith.constant 0 : i32
    return %c0_i32, %c0_i32_0 : i32, i32
  }
  func.func @transform_5(%arg0: i32) -> (i32, i32) {
    %c0_i32 = arith.constant 0 : i32
    %c0_i32_0 = arith.constant 0 : i32
    %c0_i32_1 = arith.constant 0 : i32
    return %c0_i32, %c0_i32_0 : i32, i32
  }
  func.func @transform_6(%arg0: i32) -> (i32, i32) {
    %c0_i32 = arith.constant 0 : i32
    %c0_i32_0 = arith.constant 0 : i32
    %c0_i32_1 = arith.constant 0 : i32
    return %c0_i32, %c0_i32_0 : i32, i32
  }
  func.func @transform_7(%arg0: i32) -> (i32, i32) {
    %c0_i32 = arith.constant 0 : i32
    %c0_i32_0 = arith.constant 0 : i32
    %c0_i32_1 = arith.constant 0 : i32
    return %c0_i32, %c0_i32_0 : i32, i32
  }
  func.func @transform_8(%arg0: i32) -> (i32, i32) {
    %c0_i32 = arith.constant 0 : i32
    %c0_i32_0 = arith.constant 0 : i32
    %c0_i32_1 = arith.constant 0 : i32
    return %c0_i32, %c0_i32_0 : i32, i32
  }
  func.func @transform_9(%arg0: i32) -> (i32, i32) {
    %c0_i32 = arith.constant 0 : i32
    %c0_i32_0 = arith.constant 0 : i32
    return %arg0, %c0_i32 : i32, i32
  }
}

</mosaic_0001>

<llo_original>
// kernel: tpu_custom_call.1
$region0: #{tpu_custom_call.1}
  #allocation0 [shape = 'u32[]', space=smem, size = 0x4, offset = 0x4, fixed_abs, tag = 'smem constant byte address 0x4 - core index']
  #allocation1 [shape = 'u32[144,128]{1,0:T(1,128)}', space=vmem, size = 0x12000, scoped, tag = 'internal scratch']
  %s0 = inlined_call_operand.hbm [shape: bf16[16,128], index: 0, kind: input, shape index: {}]
  %s1 = inlined_call_operand.hbm [shape: bf16[128,128], index: 1, kind: input, shape index: {}]
  %s2 = inlined_call_operand.vmem [shape: f32[1,128], index: 2, kind: input, shape index: {}]
  %s3 = inlined_call_operand.hbm [shape: bf16[128,128], index: 3, kind: input, shape index: {}]
  %s4 = inlined_call_operand.vmem [shape: f32[1,128], index: 4, kind: input, shape index: {}]
  %s5 = inlined_call_operand.hbm [shape: bf16[128,128], index: 5, kind: input, shape index: {}]
  %s6 = inlined_call_operand.vmem [shape: f32[1,128], index: 6, kind: input, shape index: {}]
  %s7 = inlined_call_operand.hbm [shape: bf16[128,128], index: 7, kind: input, shape index: {}]
  %s8 = inlined_call_operand.vmem [shape: f32[1,128], index: 8, kind: input, shape index: {}]
  %s9 = inlined_call_operand.hbm [shape: f32[16,128], index: 9, kind: output, shape index: {}]
  %s10 = sld [smem:[#allocation0]]
  $region66: #{tpu_custom_call.1} parent=0
    _
  %s12 = ssub.s32 1, %s10
  %s13 = scalar_select 0, %s12, %s10
  $region1: #{tpu_custom_call.1} parent=0
    #allocation2 [shape = 'u8[4096]{0}', space=vmem, size = 0x1000, scoped, tag = 'input window, operand 0, single buffered']
    #allocation3 [shape = 's32[1]{0}', space=sflag, size = 0x4, scoped, tag = 'scoped memory for tpu_custom_call.1']
    #allocation4 [shape = 's32[1]{0}', space=sflag, size = 0x4, scoped, tag = 'scoped memory for tpu_custom_call.1']
    #allocation5 [shape = 'u8[32768]{0}', space=vmem, size = 0x8000, scoped, tag = 'input window, operand 1, single buffered']
    #allocation6 [shape = 's32[1]{0}', space=sflag, size = 0x4, scoped, tag = 'scoped memory for tpu_custom_call.1']
    #allocation7 [shape = 'u8[32768]{0}', space=vmem, size = 0x8000, scoped, tag = 'input window, operand 3, single buffered']
    #allocation8 [shape = 'u8[32768]{0}', space=vmem, size = 0x8000, scoped, tag = 'input window, operand 5, single buffered']
    #allocation9 [shape = 's32[1]{0}', space=sflag, size = 0x4, scoped, tag = 'scoped memory for tpu_custom_call.1']
    #allocation10 [shape = 'u8[32768]{0}', space=vmem, size = 0x8000, scoped, tag = 'input window, operand 7, single buffered']
    #allocation11 [shape = 'u8[8192]{0}', space=vmem, size = 0x2000, scoped, tag = 'output window, operand 0, single buffered']
    %14 = vsyncpa [#allocation3], 0
    %15 = vsyncpa [#allocation6], 0
    %16 = vsyncpa [#allocation9], 0
    %17 = vsyncpa [#allocation4], 0
    // Predicated region
    $region2: #{tpu_custom_call.1} parent=1 // pred_check
      _
    $region3: #{tpu_custom_call.1} parent=1 // pred_check_branch
      %19 = sbr.rel (0) target = $region5
    $region4: #{tpu_custom_call.1} parent=1 // pred_region
      %s21 = ssub.s32 128, 128
      %22 = vsyncadd [#allocation3], %s21
      %s23 = sshll.u32 [#allocation2], 4
      %s24 = int_to_ptr.vmem [resolvable:$true] %s23
      %29 = dma.hbm_to_vmem [thread:$0]  %s0, 128, %s24, [#allocation3], 64, 64, 4
    $region5: #{tpu_custom_call.1} parent=1 // pred_fallthru
      _
    // Predicated region
    $region6: #{tpu_custom_call.1} parent=1 // pred_check
      _
    $region7: #{tpu_custom_call.1} parent=1 // pred_check_branch
      %31 = sbr.rel (0) target = $region9
    $region8: #{tpu_custom_call.1} parent=1 // pred_region
      %s33 = ssub.s32 1024, 1024
      %34 = vsyncadd [#allocation6], %s33
      %s35 = sshll.u32 [#allocation5], 4
      %s36 = int_to_ptr.vmem [resolvable:$true] %s35
      %41 = dma.hbm_to_vmem [thread:$0]  %s1, 1024, %s36, [#allocation6], 64, 64, 4
    $region9: #{tpu_custom_call.1} parent=1 // pred_fallthru
      _
    // Predicated region
    $region10: #{tpu_custom_call.1} parent=1 // pred_check
      _
    $region11: #{tpu_custom_call.1} parent=1 // pred_check_branch
      %43 = sbr.rel (0) target = $region13
    $region12: #{tpu_custom_call.1} parent=1 // pred_region
      _
    $region13: #{tpu_custom_call.1} parent=1 // pred_fallthru
      _
    // Predicated region
    $region14: #{tpu_custom_call.1} parent=1 // pred_check
      _
    $region15: #{tpu_custom_call.1} parent=1 // pred_check_branch
      %45 = sbr.rel (0) target = $region17
    $region16: #{tpu_custom_call.1} parent=1 // pred_region
      %s47 = ssub.s32 1024, 1024
      %48 = vsyncadd [#allocation6], %s47
      %s49 = sshll.u32 [#allocation7], 4
      %s50 = int_to_ptr.vmem [resolvable:$true] %s49
      %55 = dma.hbm_to_vmem [thread:$0]  %s3, 1024, %s50, [#allocation6], 64, 64, 4
    $region17: #{tpu_custom_call.1} parent=1 // pred_fallthru
      _
    // Predicated region
    $region18: #{tpu_custom_call.1} parent=1 // pred_check
      _
    $region19: #{tpu_custom_call.1} parent=1 // pred_check_branch
      %57 = sbr.rel (0) target = $region21
    $region20: #{tpu_custom_call.1} parent=1 // pred_region
      _
    $region21: #{tpu_custom_call.1} parent=1 // pred_fallthru
      _
    // Predicated region
    $region22: #{tpu_custom_call.1} parent=1 // pred_check
      _
    $region23: #{tpu_custom_call.1} parent=1 // pred_check_branch
      %59 = sbr.rel (0) target = $region25
    $region24: #{tpu_custom_call.1} parent=1 // pred_region
      %s61 = ssub.s32 1024, 1024
      %62 = vsyncadd [#allocation9], %s61
      %s63 = sshll.u32 [#allocation8], 4
      %s64 = int_to_ptr.vmem [resolvable:$true] %s63
      %69 = dma.hbm_to_vmem [thread:$0]  %s5, 1024, %s64, [#allocation9], 64, 64, 4
    $region25: #{tpu_custom_call.1} parent=1 // pred_fallthru
      _
    // Predicated region
    $region26: #{tpu_custom_call.1} parent=1 // pred_check
      _
    $region27: #{tpu_custom_call.1} parent=1 // pred_check_branch
      %71 = sbr.rel (0) target = $region29
    $region28: #{tpu_custom_call.1} parent=1 // pred_region
      _
    $region29: #{tpu_custom_call.1} parent=1 // pred_fallthru
      _
    // Predicated region
    $region30: #{tpu_custom_call.1} parent=1 // pred_check
      _
    $region31: #{tpu_custom_call.1} parent=1 // pred_check_branch
      %73 = sbr.rel (0) target = $region33
    $region32: #{tpu_custom_call.1} parent=1 // pred_region
      %s75 = ssub.s32 1024, 1024
      %76 = vsyncadd [#allocation9], %s75
      %s77 = sshll.u32 [#allocation10], 4
      %s78 = int_to_ptr.vmem [resolvable:$true] %s77
      %83 = dma.hbm_to_vmem [thread:$0]  %s7, 1024, %s78, [#allocation9], 64, 64, 4
    $region33: #{tpu_custom_call.1} parent=1 // pred_fallthru
      _
    // Predicated region
    $region34: #{tpu_custom_call.1} parent=1 // pred_check
      _
    $region35: #{tpu_custom_call.1} parent=1 // pred_check_branch
      %85 = sbr.rel (0) target = $region37
    $region36: #{tpu_custom_call.1} parent=1 // pred_region
      _
    $region37: #{tpu_custom_call.1} parent=1 // pred_fallthru
      _
    // Predicated region
    $region38: #{tpu_custom_call.1} parent=1 // pred_check
      _
    $region39: #{tpu_custom_call.1} parent=1 // pred_check_branch
      %87 = sbr.rel (0) target = $region41
    $region40: #{tpu_custom_call.1} parent=1 // pred_region
      %88 = dma.done [#allocation3], 128
    $region41: #{tpu_custom_call.1} parent=1 // pred_fallthru
      _
    // Predicated region
    $region42: #{tpu_custom_call.1} parent=1 // pred_check
      _
    $region43: #{tpu_custom_call.1} parent=1 // pred_check_branch
      %90 = sbr.rel (0) target = $region45
    $region44: #{tpu_custom_call.1} parent=1 // pred_region
      %91 = dma.done [#allocation6], 1024
    $region45: #{tpu_custom_call.1} parent=1 // pred_fallthru
      _
    // Predicated region
    $region46: #{tpu_custom_call.1} parent=1 // pred_check
      _
    $region47: #{tpu_custom_call.1} parent=1 // pred_check_branch
      %93 = sbr.rel (0) target = $region49
    $region48: #{tpu_custom_call.1} parent=1 // pred_region
      %94 = dma.done [#allocation6], 1024
    $region49: #{tpu_custom_call.1} parent=1 // pred_fallthru
      _
    // Predicated region
    $region50: #{tpu_custom_call.1} parent=1 // pred_check
      _
    $region51: #{tpu_custom_call.1} parent=1 // pred_check_branch
      %96 = sbr.rel (0) target = $region53
    $region52: #{tpu_custom_call.1} parent=1 // pred_region
      %97 = dma.done [#allocation9], 1024
    $region53: #{tpu_custom_call.1} parent=1 // pred_fallthru
      _
    // Predicated region
    $region54: #{tpu_custom_call.1} parent=1 // pred_check
      _
    $region55: #{tpu_custom_call.1} parent=1 // pred_check_branch
      %99 = sbr.rel (0) target = $region57
    $region56: #{tpu_custom_call.1} parent=1 // pred_region
      %100 = dma.done [#allocation9], 1024
    $region57: #{tpu_custom_call.1} parent=1 // pred_fallthru
      _
    %v102 = vld [vmem:[%s2] sm:$0x1]
    %v103 = vld [vmem:[%s4] sm:$0x1]
    %v104 = vld [vmem:[%s6] sm:$0x1]
    %v105 = vld [vmem:[%s8] sm:$0x1]
    %v106 = vld [vmem:[#allocation2] sm:$0xf]
    %v107 = vld [vmem:[#allocation2 + $0x4] sm:$0xf]
    %v108 = vld [vmem:[#allocation5] sm:$0xf]
    %v109 = vld [vmem:[#allocation5 + $0x4] sm:$0xf]
    %v110 = vld [vmem:[#allocation5 + $0x8] sm:$0xf]
    %v111 = vld [vmem:[#allocation5 + $0xc] sm:$0xf]
    %v112 = vld [vmem:[#allocation5 + $0x10] sm:$0xf]
    %v113 = vld [vmem:[#allocation5 + $0x14] sm:$0xf]
    %v114 = vld [vmem:[#allocation5 + $0x18] sm:$0xf]
    %v115 = vld [vmem:[#allocation5 + $0x1c] sm:$0xf]
    %v116 = vld [vmem:[#allocation5 + $0x20] sm:$0xf]
    %v117 = vld [vmem:[#allocation5 + $0x24] sm:$0xf]
    %v118 = vld [vmem:[#allocation5 + $0x28] sm:$0xf]
    %v119 = vld [vmem:[#allocation5 + $0x2c] sm:$0xf]
    %v120 = vld [vmem:[#allocation5 + $0x30] sm:$0xf]
    %v121 = vld [vmem:[#allocation5 + $0x34] sm:$0xf]
    %v122 = vld [vmem:[#allocation5 + $0x38] sm:$0xf]
    %v123 = vld [vmem:[#allocation5 + $0x3c] sm:$0xf]
    %v125 = vlaneseq
    %v126 = vshrl.u32 %v125, 7
    %v127 = vsub.s32 0, %v126
    %v128 = vrot.slane %v102, %v127
    %v132 = vunpack.c.l.b16 %v106
    %v133 = vunpack.c.l.b16 %v107
    %v134 = vpack.c.b16 %v133, %v132
    %v152 = vunpack.c.l.b16 %v108
    %v153 = vunpack.c.l.b16 %v109
    %v154 = vunpack.c.l.b16 %v110
    %v155 = vunpack.c.l.b16 %v111
    %v156 = vunpack.c.l.b16 %v112
    %v157 = vunpack.c.l.b16 %v113
    %v158 = vunpack.c.l.b16 %v114
    %v159 = vunpack.c.l.b16 %v115
    %v160 = vunpack.c.l.b16 %v116
    %v161 = vunpack.c.l.b16 %v117
    %v162 = vunpack.c.l.b16 %v118
    %v163 = vunpack.c.l.b16 %v119
    %v164 = vunpack.c.l.b16 %v120
    %v165 = vunpack.c.l.b16 %v121
    %v166 = vunpack.c.l.b16 %v122
    %v167 = vunpack.c.l.b16 %v123
    %v168 = vpack.c.b16 %v153, %v152
    %v169 = vpack.c.b16 %v155, %v154
    %v170 = vpack.c.b16 %v157, %v156
    %v171 = vpack.c.b16 %v159, %v158
    %v172 = vpack.c.b16 %v161, %v160
    %v173 = vpack.c.b16 %v163, %v162
    %v174 = vpack.c.b16 %v165, %v164
    %v175 = vpack.c.b16 %v167, %v166
    %184 = vmatprep.subr.bf16.mxu0 0
    %185 = vmatpush1.bf16.msra.mxu0 %v175
    %186 = vmatprep.subr.bf16.mxu0 0
    %187 = vmatpush1.bf16.msra.mxu0 %v174
    %188 = vmatprep.subr.bf16.mxu0 0
    %189 = vmatpush1.bf16.msra.mxu0 %v173
    %190 = vmatprep.subr.bf16.mxu0 0
    %191 = vmatpush1.bf16.msra.mxu0 %v172
    %192 = vmatprep.subr.bf16.mxu0 0
    %193 = vmatpush1.bf16.msra.mxu0 %v171
    %194 = vmatprep.subr.bf16.mxu0 0
    %195 = vmatpush1.bf16.msra.mxu0 %v170
    %196 = vmatprep.subr.bf16.mxu0 0
    %197 = vmatpush1.bf16.msra.mxu0 %v169
    %198 = vmatprep.subr.bf16.mxu0 0
    %199 = vmatpush1.bf16.msra.mxu0 %v168
    %200 = vmatprep.subr.bf16.mxu0 0
    %201 = vmatpush2.bf16.msra.mxu0 0
    %202 = vmatprep.subr.bf16.mxu0 0
    %203 = vmatpush2.bf16.msra.mxu0 0
    %204 = vmatprep.subr.bf16.mxu0 0
    %205 = vmatpush2.bf16.msra.mxu0 0
    %206 = vmatprep.subr.bf16.mxu0 0
    %207 = vmatpush2.bf16.msra.mxu0 0
    %208 = vmatprep.subr.bf16.mxu0 0
    %209 = vmatpush2.bf16.msra.mxu0 0
    %210 = vmatprep.subr.bf16.mxu0 0
    %211 = vmatpush2.bf16.msra.mxu0 0
    %212 = vmatprep.subr.bf16.mxu0 0
    %213 = vmatpush2.bf16.msra.mxu0 0
    %214 = vmatprep.subr.bf16.mxu0 0
    %215 = vmatpush2.bf16.msra.mxu0 0
    %216 = vmatprep.mubr.bf16.mxu0 0
    %217 = vmatmul.mubr.bf16.gmra.mxu0 %v134
    %v218 = vpop.f32.mrf.mxu0
    %v219 = vadd.f32 %v128, %v218
    %v220 = vpop.f32.mrf.mxu0
    %v221 = vpop.f32.mrf.mxu0
    %v222 = vadd.f32 %v128, %v221
    %v223 = vpop.f32.mrf.mxu0
    %224 = vdwg.mxu0
    %v225 = vmul.f32 %v219, 0.5
    %v226 = vmul.f32 %v222, 0.5
    %v227 = vtanh.pop %v225
    %v228 = vtanh.pop %v226
    %v229 = vmul.f32 %v227, 0.5
    %v230 = vmul.f32 %v228, 0.5
    %v231 = vadd.f32 %v229, 0.5
    %v232 = vadd.f32 %v230, 0.5
    %v233 = vpack.c.bf16 %v232, %v231
    %v234 = vld [vmem:[#allocation7] sm:$0xf]
    %v235 = vld [vmem:[#allocation7 + $0x4] sm:$0xf]
    %v236 = vld [vmem:[#allocation7 + $0x8] sm:$0xf]
    %v237 = vld [vmem:[#allocation7 + $0xc] sm:$0xf]
    %v238 = vld [vmem:[#allocation7 + $0x10] sm:$0xf]
    %v239 = vld [vmem:[#allocation7 + $0x14] sm:$0xf]
    %v240 = vld [vmem:[#allocation7 + $0x18] sm:$0xf]
    %v241 = vld [vmem:[#allocation7 + $0x1c] sm:$0xf]
    %v242 = vld [vmem:[#allocation7 + $0x20] sm:$0xf]
    %v243 = vld [vmem:[#allocation7 + $0x24] sm:$0xf]
    %v244 = vld [vmem:[#allocation7 + $0x28] sm:$0xf]
    %v245 = vld [vmem:[#allocation7 + $0x2c] sm:$0xf]
    %v246 = vld [vmem:[#allocation7 + $0x30] sm:$0xf]
    %v247 = vld [vmem:[#allocation7 + $0x34] sm:$0xf]
    %v248 = vld [vmem:[#allocation7 + $0x38] sm:$0xf]
    %v249 = vld [vmem:[#allocation7 + $0x3c] sm:$0xf]
    %v251 = vlaneseq
    %v252 = vshrl.u32 %v251, 7
    %v253 = vsub.s32 0, %v252
    %v254 = vrot.slane %v103, %v253
    %v272 = vunpack.c.l.b16 %v234
    %v273 = vunpack.c.l.b16 %v235
    %v274 = vunpack.c.l.b16 %v236
    %v275 = vunpack.c.l.b16 %v237
    %v276 = vunpack.c.l.b16 %v238
    %v277 = vunpack.c.l.b16 %v239
    %v278 = vunpack.c.l.b16 %v240
    %v279 = vunpack.c.l.b16 %v241
    %v280 = vunpack.c.l.b16 %v242
    %v281 = vunpack.c.l.b16 %v243
    %v282 = vunpack.c.l.b16 %v244
    %v283 = vunpack.c.l.b16 %v245
    %v284 = vunpack.c.l.b16 %v246
    %v285 = vunpack.c.l.b16 %v247
    %v286 = vunpack.c.l.b16 %v248
    %v287 = vunpack.c.l.b16 %v249
    %v288 = vpack.c.b16 %v273, %v272
    %v289 = vpack.c.b16 %v275, %v274
    %v290 = vpack.c.b16 %v277, %v276
    %v291 = vpack.c.b16 %v279, %v278
    %v292 = vpack.c.b16 %v281, %v280
    %v293 = vpack.c.b16 %v283, %v282
    %v294 = vpack.c.b16 %v285, %v284
    %v295 = vpack.c.b16 %v287, %v286
    %304 = vmatprep.subr.bf16.mxu0 0
    %305 = vmatpush1.bf16.msra.mxu0 %v295
    %306 = vmatprep.subr.bf16.mxu0 0
    %307 = vmatpush1.bf16.msra.mxu0 %v294
    %308 = vmatprep.subr.bf16.mxu0 0
    %309 = vmatpush1.bf16.msra.mxu0 %v293
    %310 = vmatprep.subr.bf16.mxu0 0
    %311 = vmatpush1.bf16.msra.mxu0 %v292
    %312 = vmatprep.subr.bf16.mxu0 0
    %313 = vmatpush1.bf16.msra.mxu0 %v291
    %314 = vmatprep.subr.bf16.mxu0 0
    %315 = vmatpush1.bf16.msra.mxu0 %v290
    %316 = vmatprep.subr.bf16.mxu0 0
    %317 = vmatpush1.bf16.msra.mxu0 %v289
    %318 = vmatprep.subr.bf16.mxu0 0
    %319 = vmatpush1.bf16.msra.mxu0 %v288
    %320 = vmatprep.subr.bf16.mxu0 0
    %321 = vmatpush2.bf16.msra.mxu0 0
    %322 = vmatprep.subr.bf16.mxu0 0
    %323 = vmatpush2.bf16.msra.mxu0 0
    %324 = vmatprep.subr.bf16.mxu0 0
    %325 = vmatpush2.bf16.msra.mxu0 0
    %326 = vmatprep.subr.bf16.mxu0 0
    %327 = vmatpush2.bf16.msra.mxu0 0
    %328 = vmatprep.subr.bf16.mxu0 0
    %329 = vmatpush2.bf16.msra.mxu0 0
    %330 = vmatprep.subr.bf16.mxu0 0
    %331 = vmatpush2.bf16.msra.mxu0 0
    %332 = vmatprep.subr.bf16.mxu0 0
    %333 = vmatpush2.bf16.msra.mxu0 0
    %334 = vmatprep.subr.bf16.mxu0 0
    %335 = vmatpush2.bf16.msra.mxu0 0
    %336 = vmatprep.mubr.bf16.mxu0 0
    %337 = vmatmul.mubr.bf16.gmra.mxu0 %v233
    %v338 = vpop.f32.mrf.mxu0
    %v339 = vadd.f32 %v254, %v338
    %v340 = vpop.f32.mrf.mxu0
    %v341 = vpop.f32.mrf.mxu0
    %v342 = vadd.f32 %v254, %v341
    %v343 = vpop.f32.mrf.mxu0
    %344 = vdwg.mxu0
    %v345 = vmul.f32 %v339, 0.5
    %v346 = vmul.f32 %v342, 0.5
    %v347 = vtanh.pop %v345
    %v348 = vtanh.pop %v346
    %v349 = vmul.f32 %v347, 0.5
    %v350 = vmul.f32 %v348, 0.5
    %v351 = vadd.f32 %v349, 0.5
    %v352 = vadd.f32 %v350, 0.5
    %v353 = vpack.c.bf16 %v352, %v351
    %v354 = vld [vmem:[#allocation8] sm:$0xf]
    %v355 = vld [vmem:[#allocation8 + $0x4] sm:$0xf]
    %v356 = vld [vmem:[#allocation8 + $0x8] sm:$0xf]
    %v357 = vld [vmem:[#allocation8 + $0xc] sm:$0xf]
    %v358 = vld [vmem:[#allocation8 + $0x10] sm:$0xf]
    %v359 = vld [vmem:[#allocation8 + $0x14] sm:$0xf]
    %v360 = vld [vmem:[#allocation8 + $0x18] sm:$0xf]
    %v361 = vld [vmem:[#allocation8 + $0x1c] sm:$0xf]
    %v362 = vld [vmem:[#allocation8 + $0x20] sm:$0xf]
    %v363 = vld [vmem:[#allocation8 + $0x24] sm:$0xf]
    %v364 = vld [vmem:[#allocation8 + $0x28] sm:$0xf]
    %v365 = vld [vmem:[#allocation8 + $0x2c] sm:$0xf]
    %v366 = vld [vmem:[#allocation8 + $0x30] sm:$0xf]
    %v367 = vld [vmem:[#allocation8 + $0x34] sm:$0xf]
    %v368 = vld [vmem:[#allocation8 + $0x38] sm:$0xf]
    %v369 = vld [vmem:[#allocation8 + $0x3c] sm:$0xf]
    %v371 = vlaneseq
    %v372 = vshrl.u32 %v371, 7
    %v373 = vsub.s32 0, %v372
    %v374 = vrot.slane %v104, %v373
    %v392 = vunpack.c.l.b16 %v354
    %v393 = vunpack.c.l.b16 %v355
    %v394 = vunpack.c.l.b16 %v356
    %v395 = vunpack.c.l.b16 %v357
    %v396 = vunpack.c.l.b16 %v358
    %v397 = vunpack.c.l.b16 %v359
    %v398 = vunpack.c.l.b16 %v360
    %v399 = vunpack.c.l.b16 %v361
    %v400 = vunpack.c.l.b16 %v362
    %v401 = vunpack.c.l.b16 %v363
    %v402 = vunpack.c.l.b16 %v364
    %v403 = vunpack.c.l.b16 %v365
    %v404 = vunpack.c.l.b16 %v366
    %v405 = vunpack.c.l.b16 %v367
    %v406 = vunpack.c.l.b16 %v368
    %v407 = vunpack.c.l.b16 %v369
    %v408 = vpack.c.b16 %v393, %v392
    %v409 = vpack.c.b16 %v395, %v394
    %v410 = vpack.c.b16 %v397, %v396
    %v411 = vpack.c.b16 %v399, %v398
    %v412 = vpack.c.b16 %v401, %v400
    %v413 = vpack.c.b16 %v403, %v402
    %v414 = vpack.c.b16 %v405, %v404
    %v415 = vpack.c.b16 %v407, %v406
    %424 = vmatprep.subr.bf16.mxu0 0
    %425 = vmatpush1.bf16.msra.mxu0 %v415
    %426 = vmatprep.subr.bf16.mxu0 0
    %427 = vmatpush1.bf16.msra.mxu0 %v414
    %428 = vmatprep.subr.bf16.mxu0 0
    %429 = vmatpush1.bf16.msra.mxu0 %v413
    %430 = vmatprep.subr.bf16.mxu0 0
    %431 = vmatpush1.bf16.msra.mxu0 %v412
    %432 = vmatprep.subr.bf16.mxu0 0
    %433 = vmatpush1.bf16.msra.mxu0 %v411
    %434 = vmatprep.subr.bf16.mxu0 0
    %435 = vmatpush1.bf16.msra.mxu0 %v410
    %436 = vmatprep.subr.bf16.mxu0 0
    %437 = vmatpush1.bf16.msra.mxu0 %v409
    %438 = vmatprep.subr.bf16.mxu0 0
    %439 = vmatpush1.bf16.msra.mxu0 %v408
    %440 = vmatprep.subr.bf16.mxu0 0
    %441 = vmatpush2.bf16.msra.mxu0 0
    %442 = vmatprep.subr.bf16.mxu0 0
    %443 = vmatpush2.bf16.msra.mxu0 0
    %444 = vmatprep.subr.bf16.mxu0 0
    %445 = vmatpush2.bf16.msra.mxu0 0
    %446 = vmatprep.subr.bf16.mxu0 0
    %447 = vmatpush2.bf16.msra.mxu0 0
    %448 = vmatprep.subr.bf16.mxu0 0
    %449 = vmatpush2.bf16.msra.mxu0 0
    %450 = vmatprep.subr.bf16.mxu0 0
    %451 = vmatpush2.bf16.msra.mxu0 0
    %452 = vmatprep.subr.bf16.mxu0 0
    %453 = vmatpush2.bf16.msra.mxu0 0
    %454 = vmatprep.subr.bf16.mxu0 0
    %455 = vmatpush2.bf16.msra.mxu0 0
    %456 = vmatprep.mubr.bf16.mxu0 0
    %457 = vmatmul.mubr.bf16.gmra.mxu0 %v353
    %v458 = vpop.f32.mrf.mxu0
    %v459 = vadd.f32 %v374, %v458
    %v460 = vpop.f32.mrf.mxu0
    %v461 = vpop.f32.mrf.mxu0
    %v462 = vadd.f32 %v374, %v461
    %v463 = vpop.f32.mrf.mxu0
    %464 = vdwg.mxu0
    %v465 = vmul.f32 %v459, 0.5
    %v466 = vmul.f32 %v462, 0.5
    %v467 = vtanh.pop %v465
    %v468 = vtanh.pop %v466
    %v469 = vmul.f32 %v467, 0.5
    %v470 = vmul.f32 %v468, 0.5
    %v471 = vadd.f32 %v469, 0.5
    %v472 = vadd.f32 %v470, 0.5
    %v473 = vpack.c.bf16 %v472, %v471
    %v474 = vld [vmem:[#allocation10] sm:$0xf]
    %v475 = vld [vmem:[#allocation10 + $0x4] sm:$0xf]
    %v476 = vld [vmem:[#allocation10 + $0x8] sm:$0xf]
    %v477 = vld [vmem:[#allocation10 + $0xc] sm:$0xf]
    %v478 = vld [vmem:[#allocation10 + $0x10] sm:$0xf]
    %v479 = vld [vmem:[#allocation10 + $0x14] sm:$0xf]
    %v480 = vld [vmem:[#allocation10 + $0x18] sm:$0xf]
    %v481 = vld [vmem:[#allocation10 + $0x1c] sm:$0xf]
    %v482 = vld [vmem:[#allocation10 + $0x20] sm:$0xf]
    %v483 = vld [vmem:[#allocation10 + $0x24] sm:$0xf]
    %v484 = vld [vmem:[#allocation10 + $0x28] sm:$0xf]
    %v485 = vld [vmem:[#allocation10 + $0x2c] sm:$0xf]
    %v486 = vld [vmem:[#allocation10 + $0x30] sm:$0xf]
    %v487 = vld [vmem:[#allocation10 + $0x34] sm:$0xf]
    %v488 = vld [vmem:[#allocation10 + $0x38] sm:$0xf]
    %v489 = vld [vmem:[#allocation10 + $0x3c] sm:$0xf]
    %v491 = vlaneseq
    %v492 = vshrl.u32 %v491, 7
    %v493 = vsub.s32 0, %v492
    %v494 = vrot.slane %v105, %v493
    %v512 = vunpack.c.l.b16 %v474
    %v513 = vunpack.c.l.b16 %v475
    %v514 = vunpack.c.l.b16 %v476
    %v515 = vunpack.c.l.b16 %v477
    %v516 = vunpack.c.l.b16 %v478
    %v517 = vunpack.c.l.b16 %v479
    %v518 = vunpack.c.l.b16 %v480
    %v519 = vunpack.c.l.b16 %v481
    %v520 = vunpack.c.l.b16 %v482
    %v521 = vunpack.c.l.b16 %v483
    %v522 = vunpack.c.l.b16 %v484
    %v523 = vunpack.c.l.b16 %v485
    %v524 = vunpack.c.l.b16 %v486
    %v525 = vunpack.c.l.b16 %v487
    %v526 = vunpack.c.l.b16 %v488
    %v527 = vunpack.c.l.b16 %v489
    %v528 = vpack.c.b16 %v513, %v512
    %v529 = vpack.c.b16 %v515, %v514
    %v530 = vpack.c.b16 %v517, %v516
    %v531 = vpack.c.b16 %v519, %v518
    %v532 = vpack.c.b16 %v521, %v520
    %v533 = vpack.c.b16 %v523, %v522
    %v534 = vpack.c.b16 %v525, %v524
    %v535 = vpack.c.b16 %v527, %v526
    %544 = vmatprep.subr.bf16.mxu0 0
    %545 = vmatpush1.bf16.msra.mxu0 %v535
    %546 = vmatprep.subr.bf16.mxu0 0
    %547 = vmatpush1.bf16.msra.mxu0 %v534
    %548 = vmatprep.subr.bf16.mxu0 0
    %549 = vmatpush1.bf16.msra.mxu0 %v533
    %550 = vmatprep.subr.bf16.mxu0 0
    %551 = vmatpush1.bf16.msra.mxu0 %v532
    %552 = vmatprep.subr.bf16.mxu0 0
    %553 = vmatpush1.bf16.msra.mxu0 %v531
    %554 = vmatprep.subr.bf16.mxu0 0
    %555 = vmatpush1.bf16.msra.mxu0 %v530
    %556 = vmatprep.subr.bf16.mxu0 0
    %557 = vmatpush1.bf16.msra.mxu0 %v529
    %558 = vmatprep.subr.bf16.mxu0 0
    %559 = vmatpush1.bf16.msra.mxu0 %v528
    %560 = vmatprep.subr.bf16.mxu0 0
    %561 = vmatpush2.bf16.msra.mxu0 0
    %562 = vmatprep.subr.bf16.mxu0 0
    %563 = vmatpush2.bf16.msra.mxu0 0
    %564 = vmatprep.subr.bf16.mxu0 0
    %565 = vmatpush2.bf16.msra.mxu0 0
    %566 = vmatprep.subr.bf16.mxu0 0
    %567 = vmatpush2.bf16.msra.mxu0 0
    %568 = vmatprep.subr.bf16.mxu0 0
    %569 = vmatpush2.bf16.msra.mxu0 0
    %570 = vmatprep.subr.bf16.mxu0 0
    %571 = vmatpush2.bf16.msra.mxu0 0
    %572 = vmatprep.subr.bf16.mxu0 0
    %573 = vmatpush2.bf16.msra.mxu0 0
    %574 = vmatprep.subr.bf16.mxu0 0
    %575 = vmatpush2.bf16.msra.mxu0 0
    %576 = vmatprep.mubr.bf16.mxu0 0
    %577 = vmatmul.mubr.bf16.gmra.mxu0 %v473
    %v578 = vpop.f32.mrf.mxu0
    %v579 = vadd.f32 %v494, %v578
    %v580 = vpop.f32.mrf.mxu0
    %v581 = vpop.f32.mrf.mxu0
    %v582 = vadd.f32 %v494, %v581
    %v583 = vpop.f32.mrf.mxu0
    %584 = vdwg.mxu0
    %585 = vst [vmem:[#allocation11] sm:$0xff] %v579
    %586 = vst [vmem:[#allocation11 + $0x8] sm:$0xff] %v582
    // Predicated region
    $region58: #{tpu_custom_call.1} parent=1 // pred_check
      _
    $region59: #{tpu_custom_call.1} parent=1 // pred_check_branch
      %588 = sbr.rel (0) target = $region61
    $region60: #{tpu_custom_call.1} parent=1 // pred_region
      %s590 = ssub.s32 256, 256
      %591 = vsyncadd [#allocation4], %s590
      %s592 = sshll.u32 [#allocation11], 4
      %s593 = int_to_ptr.vmem [resolvable:$true] %s592
      %598 = dma.vmem_to_hbm [thread:$0]  %s593, 256, %s9, [#allocation4], 128, 128, 8
    $region61: #{tpu_custom_call.1} parent=1 // pred_fallthru
      _
    // Predicated region
    $region62: #{tpu_custom_call.1} parent=1 // pred_check
      _
    $region63: #{tpu_custom_call.1} parent=1 // pred_check_branch
      %600 = sbr.rel (0) target = $region65
    $region64: #{tpu_custom_call.1} parent=1 // pred_region
      %601 = dma.done [#allocation4], 256
    $region65: #{tpu_custom_call.1} parent=1 // pred_fallthru
      _
    %602 = vsyncpa [#allocation3], 1
    %603 = vsyncpa [#allocation6], 1
    %604 = vsyncpa [#allocation9], 1
    %605 = vsyncpa [#allocation4], 1

</llo_original>
